<compile_context>
chip_gen: v7x
topology: tpu7x:2x2x1
jax: 0.10.0
libtpu: 0.0.40
codegen_flags: <defaults>
</compile_context>

<pallas_src>
import jax
import jax.numpy as jnp
from jax.experimental import pallas as pl
from jax.experimental.pallas import tpu as pltpu


# ----------------------------- Pallas kernels ------------------------------

def _conv_ds_kernel(x_main_ref, x_halo_ref, w_ref, b_ref, o_ref):
    """3x3 stride-2 conv on one (batch, row-block, Cout-block) tile.

    x_main_ref: (1, Rb, 2, Wo+1, 2*Cin)  row-pairs [rb*Rb, rb*Rb+Rb)
    x_halo_ref: (1, 1,  2, Wo+1, 2*Cin)  row-pair  rb*Rb+Rb  (halo for kh=2)
    w_ref:      (9*Cin, Co_blk)          fused-K weights   (Cin % 128 == 0)
                (3, 3*Cin, Co_blk)       per-kh weights    (otherwise)
    b_ref:      (1, Co_blk)
    o_ref:      (1, Rb*Wo, Co_blk)
    """
    rb = x_main_ref.shape[1]
    wo = x_main_ref.shape[3] - 1
    cin = x_main_ref.shape[4] // 2
    fused = (w_ref.ndim == 2)

    main = x_main_ref[0]        # (Rb, 2, Wo+1, 2Cin)
    halo = x_halo_ref[0]        # (1,  2, Wo+1, 2Cin)

    def row_slab(kh):
        # rows 2*r + kh for the Rb output rows of this block -> (Rb, Wo+1, 2Cin)
        if kh == 0:
            return main[:, 0]
        if kh == 1:
            return main[:, 1]
        # kh == 2: row-pairs 1..Rb (member 0); last one comes from the halo.
        if rb == 1:
            return halo[:, 0]
        return jnp.concatenate([main[1:, 0], halo[:, 0]], axis=0)

    if fused:
        # Build the (P, 9*Cin) patch block in VMEM and do ONE MXU matmul.
        pieces = []
        for kh in range(3):
            slab = row_slab(kh)
            pieces.append(slab[:, :wo, :])            # taps (kh,0),(kh,1): 2*Cin lanes
            pieces.append(slab[:, 1:wo + 1, :cin])    # tap  (kh,2):        Cin lanes
        patches = jnp.concatenate(pieces, axis=-1)    # (Rb, Wo, 9*Cin), 128-aligned
        patches = patches.reshape(rb * wo, 9 * cin)
        acc = jnp.dot(patches, w_ref[...], preferred_element_type=jnp.float32)
    else:
        # Small / unaligned Cin: 6 accumulated matmuls, contiguous slices only.
        acc = jnp.zeros((rb * wo, o_ref.shape[-1]), jnp.float32)
        for kh in range(3):
            slab = row_slab(kh)
            wk = w_ref[kh]                                          # (3*Cin, Co_blk)
            p01 = slab[:, :wo, :].reshape(rb * wo, 2 * cin)         # taps (kh,0),(kh,1)
            p2 = slab[:, 1:wo + 1, :cin].reshape(rb * wo, cin)      # tap  (kh,2)
            acc = acc + jnp.dot(p01, wk[:2 * cin],
                                preferred_element_type=jnp.float32)
            acc = acc + jnp.dot(p2, wk[2 * cin:],
                                preferred_element_type=jnp.float32)

    acc = acc + b_ref[...].astype(jnp.float32)        # (1, Co_blk) broadcasts over P
    o_ref[0] = acc.astype(o_ref.dtype)


def _avg_pool_kernel(x_ref, m_ref, o_ref):
    # x_ref: (RB, 2*W) -- one output row's 2x2 windows live on the 2*W lanes
    # m_ref: (2*W, Wo) -- 0.25-valued pooling matrix
    # o_ref: (RB, Wo)
    o_ref[...] = jnp.dot(
        x_ref[...], m_ref[...], preferred_element_type=jnp.float32
    ).astype(o_ref.dtype)


# ----------------------------- tiling helpers -------------------------------

def _pick_row_block(ho, wo, per_row_bytes, budget=6 << 20, max_pixels=2048):
    """Largest divisor of Ho whose per-step footprint fits the VMEM budget."""
    cap = max(1, min(ho,
                     budget // max(1, per_row_bytes),
                     max(1, max_pixels // max(1, wo))))
    divs = [d for d in range(1, ho + 1) if ho % d == 0]
    good = [d for d in divs if d <= cap and ((d * wo) % 8 == 0 or d == ho)]
    if good:
        return max(good)
    ok = [d for d in divs if d <= cap]
    return max(ok) if ok else ho


def _pick_pool_rows(total, bytes_per_row, budget=4 << 20, max_rows=2048):
    if total <= 8:
        return total
    rb = min(total, max_rows, max(8, budget // max(1, bytes_per_row)))
    return max(8, (rb // 8) * 8)


# ------------------------------- wrappers -----------------------------------

def conv_downsample_2d(x_nchw, w_oihw, bias, padding=1):
    """Conv2d(Cin, Cout, 3, stride=2, padding=padding) via Pallas."""
    n, cin, h, w = x_nchw.shape
    cout = w_oihw.shape[0]
    k, stride, p = 3, 2, padding
    ho = (h + 2 * p - k) // stride + 1
    wo = (w + 2 * p - k) // stride + 1
    assert ho > 0 and wo > 0
    itemsize = x_nchw.dtype.itemsize

    # NHWC + spatial pad, sized so the (row-pair, col-pair) reshape is exact.
    # (extra bottom/right zero rows/cols beyond PyTorch's pad are never read.)
    xh = jnp.transpose(x_nchw, (0, 2, 3, 1))
    hp_e, wp_e = 2 * (ho + 1), 2 * (wo + 1)
    pad_b, pad_r = hp_e - h - p, wp_e - w - p
    assert pad_b >= 0 and pad_r >= 0
    xp = jnp.pad(xh, ((0, 0), (p, pad_b), (p, pad_r), (0, 0)))
    # Free row-major reshape: rows -> (row-pair, parity), cols -> (col-pair, 2*Cin lanes).
    x2 = xp.reshape(n, ho + 1, 2, wo + 1, 2 * cin)

    # Lane-dense output: pad Cout to a multiple of 128 (sliced off afterwards).
    cout_p = ((cout + 127) // 128) * 128
    co_blk = 256 if cout_p % 256 == 0 else 128
    n_cb = cout_p // co_blk

    w_t = jnp.transpose(w_oihw, (2, 3, 1, 0))            # (kh, kw, Cin, Cout)
    fused = (cin % 128 == 0)
    if fused:
        w_arr = jnp.pad(w_t.reshape(9 * cin, cout), ((0, 0), (0, cout_p - cout)))
        w_block = (9 * cin, co_blk)
        w_map = lambda ni, ri, ci: (0, ci)
    else:
        w_arr = jnp.pad(w_t.reshape(3, 3 * cin, cout),
                        ((0, 0), (0, 0), (0, cout_p - cout)))
        w_block = (3, 3 * cin, co_blk)
        w_map = lambda ni, ri, ci: (0, 0, ci)
    b_arr = jnp.pad(bias, (0, cout_p - cout)).reshape(1, cout_p)

    # VMEM-driven row-block size (double-buffered x/out + in-kernel transients).
    per_row = (2 * (2 * (wo + 1) * 2 * cin) * itemsize
               + wo * 9 * cin * 4
               + wo * co_blk * (2 * itemsize + 4))
    rb = _pick_row_block(ho, wo, per_row)
    n_rb = ho // rb

    # Single-buffer large weight blocks (they are invariant across (n, row) steps).
    w_spec_kwargs = {}
    if (w_arr.size // n_cb) * w_arr.dtype.itemsize > (2 << 20):
        w_spec_kwargs["pipeline_mode"] = pl.Buffered(1)

    out = pl.pallas_call(
        _conv_ds_kernel,
        out_shape=jax.ShapeDtypeStruct((n, ho * wo, cout_p), x_nchw.dtype),
        grid=(n, n_rb, n_cb),
        in_specs=[
            # main row-pair block; index does not depend on the Cout axis -> no re-DMA
            pl.BlockSpec((1, rb, 2, wo + 1, 2 * cin),
                         lambda ni, ri, ci: (ni, ri, 0, 0, 0)),
            # one halo row-pair (needed only by the kh=2 taps of the last row)
            pl.BlockSpec((1, 1, 2, wo + 1, 2 * cin),
                         lambda ni, ri, ci: (ni, (ri + 1) * rb, 0, 0, 0)),
            pl.BlockSpec(w_block, w_map, **w_spec_kwargs),
            pl.BlockSpec((1, co_blk), lambda ni, ri, ci: (0, ci)),
        ],
        out_specs=pl.BlockSpec((1, rb * wo, co_blk),
                               lambda ni, ri, ci: (ni, ri, ci)),
        compiler_params=pltpu.CompilerParams(
            dimension_semantics=("parallel", "parallel", "arbitrary"),
            vmem_limit_bytes=48 * 1024 * 1024),
    )(x2, x2, w_arr, b_arr)

    out = out.reshape(n, ho, wo, cout_p)[..., :cout]
    return jnp.transpose(out, (0, 3, 1, 2))              # back to NCHW


def avg_pool_downsample_2d(x_nchw):
    """AvgPool2d(kernel_size=2, stride=2) via Pallas, natively in NCHW."""
    n, c, h, w = x_nchw.shape
    assert h % 2 == 0 and w % 2 == 0, "AvgPool2d(2,2) port requires even H and W"
    ho, wo = h // 2, w // 2
    t_rows = n * c * ho

    # Free row-major reshape: row-pair (2 rows of W) -> 2*W lanes per output row.
    x2 = x_nchw.reshape(t_rows, 2 * w)

    # (2W, Wo) pooling matrix: each output column sums its 4 window taps * 0.25.
    lane = jnp.arange(2 * w)
    m = (((lane[:, None] % w) // 2) == jnp.arange(wo)[None, :])
    m = m.astype(x_nchw.dtype) * 0.25

    rb = _pick_pool_rows(t_rows, 2 * w * x_nchw.dtype.itemsize)

    out = pl.pallas_call(
        _avg_pool_kernel,
        out_shape=jax.ShapeDtypeStruct((t_rows, wo), x_nchw.dtype),
        grid=(pl.cdiv(t_rows, rb),),
        in_specs=[pl.BlockSpec((rb, 2 * w), lambda i: (i, 0)),
                  pl.BlockSpec((2 * w, wo), lambda i: (0, 0))],
        out_specs=pl.BlockSpec((rb, wo), lambda i: (i, 0)),
        compiler_params=pltpu.CompilerParams(
            dimension_semantics=("parallel",),
            vmem_limit_bytes=48 * 1024 * 1024),
    )(x2, m)

    return out.reshape(n, c, ho, wo)                      # already NCHW


class Downsample:
    """JAX/Pallas port of the PyTorch Downsample module (dims=2)."""

    def __init__(self, channels, use_conv, dims=2, out_channels=None,
                 padding=1, key=None):
        assert dims == 2, "only dims=2 is implemented in this Pallas port"
        self.channels = channels
        self.out_channels = out_channels or channels
        self.use_conv = use_conv
        self.dims = dims
        self.padding = padding
        if use_conv:
            key = key if key is not None else jax.random.PRNGKey(0)
            kw_key, kb_key = jax.random.split(key)
            fan_in = channels * 3 * 3
            bound = 1.0 / jnp.sqrt(fan_in)  # mimic PyTorch Conv2d default init
            self.weight = jax.random.uniform(
                kw_key, (self.out_channels, channels, 3, 3),
                minval=-bound, maxval=bound, dtype=jnp.float32)
            self.bias = jax.random.uniform(
                kb_key, (self.out_channels,),
                minval=-bound, maxval=bound, dtype=jnp.float32)
        else:
            assert self.channels == self.out_channels

    def __call__(self, x):
        assert x.shape[1] == self.channels
        if self.use_conv:
            return conv_downsample_2d(x, self.weight, self.bias, self.padding)
        return avg_pool_downsample_2d(x)


# ------------------------------ references -----------------------------------

def _ref_conv(x_nchw, w_oihw, bias, padding):
    out = jax.lax.conv_general_dilated(
        x_nchw, w_oihw, window_strides=(2, 2),
        padding=[(padding, padding), (padding, padding)],
        dimension_numbers=("NCHW", "OIHW", "NCHW"))
    return out + bias[None, :, None, None]


def _ref_avg_pool(x_nchw):
    n, c, h, w = x_nchw.shape
    return x_nchw.reshape(n, c, h // 2, 2, w // 2, 2).mean(axis=(3, 5))


# --------------------------------- main --------------------------------------

if __name__ == "__main__":
    key = jax.random.PRNGKey(0)
    kx, kp = jax.random.split(key)

    # NCHW input, matching the PyTorch module's convention.
    x = jax.random.normal(kx, (2, 4, 16, 16), dtype=jnp.float32)

    # use_conv=True path (Conv2d 3x3 stride 2 pad 1, 4 -> 8 channels)
    ds_conv = Downsample(channels=4, use_conv=True, dims=2,
                         out_channels=8, padding=1, key=kp)
    y_conv = jax.block_until_ready(ds_conv(x))
    y_conv_ref = _ref_conv(x, ds_conv.weight, ds_conv.bias, padding=1)
    assert y_conv.shape == (2, 8, 8, 8), y_conv.shape
    assert jnp.allclose(y_conv, y_conv_ref, atol=1e-4, rtol=1e-4)

    # use_conv=False path (AvgPool2d(2, 2))
    ds_pool = Downsample(channels=4, use_conv=False, dims=2)
    y_pool = jax.block_until_ready(ds_pool(x))
    y_pool_ref = _ref_avg_pool(x)
    assert y_pool.shape == (2, 4, 8, 8), y_pool.shape
    assert jnp.allclose(y_pool, y_pool_ref, atol=1e-4, rtol=1e-4)

    print("KERNEL_OK")
</pallas_src>

<mosaic_0001>
module attributes {stable_mosaic.version = 11 : i64} {
  func.func @_conv_ds_kernel(%arg0: i32, %arg1: i32, %arg2: i32, %arg3: memref<1x8x2x9x8xf32, #tpu.memory_space<vmem>>, %arg4: memref<1x1x2x9x8xf32, #tpu.memory_space<vmem>>, %arg5: memref<3x12x128xf32, #tpu.memory_space<vmem>>, %arg6: memref<1x128xf32, #tpu.memory_space<vmem>>, %arg7: memref<1x64x128xf32, #tpu.memory_space<vmem>>) attributes {dimension_semantics = [#tpu.dimension_semantics<parallel>, #tpu.dimension_semantics<parallel>, #tpu.dimension_semantics<arbitrary>], iteration_bounds = array<i64: 2, 1, 1>, scalar_prefetch = 0 : i64, scratch_operands = 0 : i64, tpu.core_type = #tpu.core_type<tc>, window_params = [{transform_indices = @transform_0, window_bounds = array<i64: 1, 8, 2, 9, 8>}, {transform_indices = @transform_1, window_bounds = array<i64: 1, 1, 2, 9, 8>}, {transform_indices = @transform_2, window_bounds = array<i64: 3, 12, 128>}, {transform_indices = @transform_3, window_bounds = array<i64: 1, 128>}, {transform_indices = @transform_4, window_bounds = array<i64: 1, 64, 128>}]} {
    %c0 = arith.constant 0 : index
    %c0_0 = arith.constant 0 : index
    %c0_1 = arith.constant 0 : index
    %c0_2 = arith.constant 0 : index
    %c0_3 = arith.constant 0 : index
    %0 = vector.load %arg3[%c0, %c0_0, %c0_1, %c0_2, %c0_3] : memref<1x8x2x9x8xf32, #tpu.memory_space<vmem>>, vector<1x8x2x9x8xf32>
    %1 = vector.shape_cast %0 : vector<1x8x2x9x8xf32> to vector<8x2x9x8xf32>
    %c0_4 = arith.constant 0 : index
    %c0_5 = arith.constant 0 : index
    %c0_6 = arith.constant 0 : index
    %c0_7 = arith.constant 0 : index
    %c0_8 = arith.constant 0 : index
    %2 = vector.load %arg4[%c0_4, %c0_5, %c0_6, %c0_7, %c0_8] : memref<1x1x2x9x8xf32, #tpu.memory_space<vmem>>, vector<1x1x2x9x8xf32>
    %3 = vector.shape_cast %2 : vector<1x1x2x9x8xf32> to vector<1x2x9x8xf32>
    %cst = arith.constant 0.000000e+00 : f32
    %4 = vector.broadcast %cst : f32 to vector<64x128xf32>
    %5 = vector.extract_strided_slice %1 {offsets = [0, 0, 0, 0], sizes = [8, 1, 9, 8], strides = [1, 1, 1, 1]} : vector<8x2x9x8xf32> to vector<8x1x9x8xf32>
    %6 = vector.shape_cast %5 : vector<8x1x9x8xf32> to vector<8x9x8xf32>
    %c0_9 = arith.constant 0 : index
    %c0_10 = arith.constant 0 : index
    %c0_11 = arith.constant 0 : index
    %7 = vector.load %arg5[%c0_9, %c0_10, %c0_11] : memref<3x12x128xf32, #tpu.memory_space<vmem>>, vector<1x12x128xf32>
    %8 = vector.shape_cast %7 : vector<1x12x128xf32> to vector<12x128xf32>
    %9 = vector.extract_strided_slice %6 {offsets = [0, 0, 0], sizes = [8, 8, 8], strides = [1, 1, 1]} : vector<8x9x8xf32> to vector<8x8x8xf32>
    %10 = vector.shape_cast %9 : vector<8x8x8xf32> to vector<64x8xf32>
    %11 = vector.extract_strided_slice %6 {offsets = [0, 1, 0], sizes = [8, 8, 4], strides = [1, 1, 1]} : vector<8x9x8xf32> to vector<8x8x4xf32>
    %12 = vector.shape_cast %11 : vector<8x8x4xf32> to vector<64x4xf32>
    %13 = vector.extract_strided_slice %8 {offsets = [0, 0], sizes = [8, 128], strides = [1, 1]} : vector<12x128xf32> to vector<8x128xf32>
    %cst_12 = arith.constant dense<0.000000e+00> : vector<64x128xf32>
    %14 = tpu.matmul %10, %13, %cst_12 {dimension_numbers = #tpu.dot_dimension_numbers<[1], [0], [0], [1], [0, 0, 1, 1], [], []>} : vector<64x8xf32>, vector<8x128xf32>, vector<64x128xf32> -> vector<64x128xf32>
    %15 = arith.addf %4, %14 : vector<64x128xf32>
    %16 = vector.extract_strided_slice %8 {offsets = [8, 0], sizes = [4, 128], strides = [1, 1]} : vector<12x128xf32> to vector<4x128xf32>
    %cst_13 = arith.constant dense<0.000000e+00> : vector<64x128xf32>
    %17 = tpu.matmul %12, %16, %cst_13 {dimension_numbers = #tpu.dot_dimension_numbers<[1], [0], [0], [1], [0, 0, 1, 1], [], []>} : vector<64x4xf32>, vector<4x128xf32>, vector<64x128xf32> -> vector<64x128xf32>
    %18 = arith.addf %15, %17 : vector<64x128xf32>
    %19 = vector.extract_strided_slice %1 {offsets = [0, 1, 0, 0], sizes = [8, 1, 9, 8], strides = [1, 1, 1, 1]} : vector<8x2x9x8xf32> to vector<8x1x9x8xf32>
    %20 = vector.shape_cast %19 : vector<8x1x9x8xf32> to vector<8x9x8xf32>
    %c1 = arith.constant 1 : index
    %c0_14 = arith.constant 0 : index
    %c0_15 = arith.constant 0 : index
    %21 = vector.load %arg5[%c1, %c0_14, %c0_15] : memref<3x12x128xf32, #tpu.memory_space<vmem>>, vector<1x12x128xf32>
    %22 = vector.shape_cast %21 : vector<1x12x128xf32> to vector<12x128xf32>
    %23 = vector.extract_strided_slice %20 {offsets = [0, 0, 0], sizes = [8, 8, 8], strides = [1, 1, 1]} : vector<8x9x8xf32> to vector<8x8x8xf32>
    %24 = vector.shape_cast %23 : vector<8x8x8xf32> to vector<64x8xf32>
    %25 = vector.extract_strided_slice %20 {offsets = [0, 1, 0], sizes = [8, 8, 4], strides = [1, 1, 1]} : vector<8x9x8xf32> to vector<8x8x4xf32>
    %26 = vector.shape_cast %25 : vector<8x8x4xf32> to vector<64x4xf32>
    %27 = vector.extract_strided_slice %22 {offsets = [0, 0], sizes = [8, 128], strides = [1, 1]} : vector<12x128xf32> to vector<8x128xf32>
    %cst_16 = arith.constant dense<0.000000e+00> : vector<64x128xf32>
    %28 = tpu.matmul %24, %27, %cst_16 {dimension_numbers = #tpu.dot_dimension_numbers<[1], [0], [0], [1], [0, 0, 1, 1], [], []>} : vector<64x8xf32>, vector<8x128xf32>, vector<64x128xf32> -> vector<64x128xf32>
    %29 = arith.addf %18, %28 : vector<64x128xf32>
    %30 = vector.extract_strided_slice %22 {offsets = [8, 0], sizes = [4, 128], strides = [1, 1]} : vector<12x128xf32> to vector<4x128xf32>
    %cst_17 = arith.constant dense<0.000000e+00> : vector<64x128xf32>
    %31 = tpu.matmul %26, %30, %cst_17 {dimension_numbers = #tpu.dot_dimension_numbers<[1], [0], [0], [1], [0, 0, 1, 1], [], []>} : vector<64x4xf32>, vector<4x128xf32>, vector<64x128xf32> -> vector<64x128xf32>
    %32 = arith.addf %29, %31 : vector<64x128xf32>
    %33 = vector.extract_strided_slice %1 {offsets = [1, 0, 0, 0], sizes = [7, 1, 9, 8], strides = [1, 1, 1, 1]} : vector<8x2x9x8xf32> to vector<7x1x9x8xf32>
    %34 = vector.shape_cast %33 : vector<7x1x9x8xf32> to vector<7x9x8xf32>
    %35 = vector.extract_strided_slice %3 {offsets = [0, 0, 0, 0], sizes = [1, 1, 9, 8], strides = [1, 1, 1, 1]} : vector<1x2x9x8xf32> to vector<1x1x9x8xf32>
    %36 = vector.shape_cast %35 : vector<1x1x9x8xf32> to vector<1x9x8xf32>
    %37 = tpu.concatenate %34, %36 in 0 : vector<7x9x8xf32>, vector<1x9x8xf32> -> vector<8x9x8xf32>
    %c2 = arith.constant 2 : index
    %c0_18 = arith.constant 0 : index
    %c0_19 = arith.constant 0 : index
    %38 = vector.load %arg5[%c2, %c0_18, %c0_19] : memref<3x12x128xf32, #tpu.memory_space<vmem>>, vector<1x12x128xf32>
    %39 = vector.shape_cast %38 : vector<1x12x128xf32> to vector<12x128xf32>
    %40 = vector.extract_strided_slice %37 {offsets = [0, 0, 0], sizes = [8, 8, 8], strides = [1, 1, 1]} : vector<8x9x8xf32> to vector<8x8x8xf32>
    %41 = vector.shape_cast %40 : vector<8x8x8xf32> to vector<64x8xf32>
    %42 = vector.extract_strided_slice %37 {offsets = [0, 1, 0], sizes = [8, 8, 4], strides = [1, 1, 1]} : vector<8x9x8xf32> to vector<8x8x4xf32>
    %43 = vector.shape_cast %42 : vector<8x8x4xf32> to vector<64x4xf32>
    %44 = vector.extract_strided_slice %39 {offsets = [0, 0], sizes = [8, 128], strides = [1, 1]} : vector<12x128xf32> to vector<8x128xf32>
    %cst_20 = arith.constant dense<0.000000e+00> : vector<64x128xf32>
    %45 = tpu.matmul %41, %44, %cst_20 {dimension_numbers = #tpu.dot_dimension_numbers<[1], [0], [0], [1], [0, 0, 1, 1], [], []>} : vector<64x8xf32>, vector<8x128xf32>, vector<64x128xf32> -> vector<64x128xf32>
    %46 = arith.addf %32, %45 : vector<64x128xf32>
    %47 = vector.extract_strided_slice %39 {offsets = [8, 0], sizes = [4, 128], strides = [1, 1]} : vector<12x128xf32> to vector<4x128xf32>
    %cst_21 = arith.constant dense<0.000000e+00> : vector<64x128xf32>
    %48 = tpu.matmul %43, %47, %cst_21 {dimension_numbers = #tpu.dot_dimension_numbers<[1], [0], [0], [1], [0, 0, 1, 1], [], []>} : vector<64x4xf32>, vector<4x128xf32>, vector<64x128xf32> -> vector<64x128xf32>
    %49 = arith.addf %46, %48 : vector<64x128xf32>
    %c0_22 = arith.constant 0 : index
    %c0_23 = arith.constant 0 : index
    %50 = vector.load %arg6[%c0_22, %c0_23] : memref<1x128xf32, #tpu.memory_space<vmem>>, vector<1x128xf32>
    %51 = vector.broadcast %50 : vector<1x128xf32> to vector<64x128xf32>
    %52 = arith.addf %49, %51 : vector<64x128xf32>
    %c0_24 = arith.constant 0 : index
    %c0_25 = arith.constant 0 : index
    %c0_26 = arith.constant 0 : index
    %53 = vector.load %arg7[%c0_24, %c0_25, %c0_26] : memref<1x64x128xf32, #tpu.memory_space<vmem>>, vector<1x64x128xf32>
    %54 = vector.shape_cast %53 : vector<1x64x128xf32> to vector<64x128xf32>
    %55 = vector.shape_cast %52 : vector<64x128xf32> to vector<1x64x128xf32>
    tpu.vector_store %arg7[%c0_24, %c0_25, %c0_26], %55 {strides = array<i32>} : memref<1x64x128xf32, #tpu.memory_space<vmem>>, vector<1x64x128xf32>,
    return
  }
  func.func @transform_0(%arg0: i32, %arg1: i32, %arg2: i32) -> (i32, i32, i32, i32, i32) {
    %c0_i32 = arith.constant 0 : i32
    %c0_i32_0 = arith.constant 0 : i32
    %c0_i32_1 = arith.constant 0 : i32
    %c0_i32_2 = arith.constant 0 : i32
    return %arg0, %arg1, %c0_i32, %c0_i32_0, %c0_i32_1 : i32, i32, i32, i32, i32
  }
  func.func @transform_1(%arg0: i32, %arg1: i32, %arg2: i32) -> (i32, i32, i32, i32, i32) {
    %c1_i32 = arith.constant 1 : i32
    %0 = arith.addi %arg1, %c1_i32 : i32
    %c8_i32 = arith.constant 8 : i32
    %1 = arith.muli %0, %c8_i32 : i32
    %c0_i32 = arith.constant 0 : i32
    %c0_i32_0 = arith.constant 0 : i32
    %c0_i32_1 = arith.constant 0 : i32
    %c0_i32_2 = arith.constant 0 : i32
    return %arg0, %1, %c0_i32, %c0_i32_0, %c0_i32_1 : i32, i32, i32, i32, i32
  }
  func.func @transform_2(%arg0: i32, %arg1: i32, %arg2: i32) -> (i32, i32, i32) {
    %c0_i32 = arith.constant 0 : i32
    %c0_i32_0 = arith.constant 0 : i32
    %c0_i32_1 = arith.constant 0 : i32
    return %c0_i32, %c0_i32_0, %arg2 : i32, i32, i32
  }
  func.func @transform_3(%arg0: i32, %arg1: i32, %arg2: i32) -> (i32, i32) {
    %c0_i32 = arith.constant 0 : i32
    %c0_i32_0 = arith.constant 0 : i32
    return %c0_i32, %arg2 : i32, i32
  }
  func.func @transform_4(%arg0: i32, %arg1: i32, %arg2: i32) -> (i32, i32, i32) {
    %c0_i32 = arith.constant 0 : i32
    return %arg0, %arg1, %arg2 : i32, i32, i32
  }
}

</mosaic_0001>

<llo_original>
// kernel: tpu_custom_call.1
$region0: #{tpu_custom_call.1}
  #allocation0 [shape = 'u32[]', space=smem, size = 0x4, offset = 0x4, fixed_abs, tag = 'smem constant byte address 0x4 - core index']
  #allocation1 [shape = 'u32[144,128]{1,0:T(1,128)}', space=vmem, size = 0x12000, scoped, tag = 'internal scratch']
  %s0 = inlined_call_operand.vmem [shape: f32[2,9,2,9,8], index: 0, kind: input, shape index: {}]
  %s1 = inlined_call_operand.vmem [shape: f32[2,9,2,9,8], index: 1, kind: input, shape index: {}]
  %s2 = inlined_call_operand.vmem [shape: f32[3,12,128], index: 2, kind: input, shape index: {}]
  %s3 = inlined_call_operand.vmem [shape: f32[1,128], index: 3, kind: input, shape index: {}]
  %s4 = inlined_call_operand.hbm [shape: f32[2,64,128], index: 4, kind: output, shape index: {}]
  %s5 = sld [smem:[#allocation0]]
  $region49: #{tpu_custom_call.1} parent=0
    _
  %s7 = ssub.s32 1, %s5
  %s8 = scalar_select 0, %s7, %s5
  $region1: #{tpu_custom_call.1} parent=0
    #allocation2 [shape = 'u8[65536]{0}', space=vmem, size = 0x10000, scoped, tag = 'output window, operand 0']
    #allocation3 [shape = 's32[2]{0}', space=sflag, size = 0x8, scoped, tag = 'scoped memory for tpu_custom_call.1']
    %9 = vsyncpa [#allocation3], 0
    %s10 = scalar_lea.sflag [#allocation3], 1
    %11 = vsyncpa %s10, 0
    loop: start=0, step=1, limit=4
    $region2: #{tpu_custom_call.1} parent=1 // loop_pre_header
      _
    $region3: #{tpu_custom_call.1} parent=1 // loop_header
      %s13 = sphi 0, %s17
      %p14 = scmp.ge.s32.totalorder %s13, 4
      %s20 = sphi 0, %s39
      %s21 = sphi 0, %s35
      %s22 = sphi 0, %s31
      %s23 = sphi 0, %s20
      %s24 = sphi 0, %s21
      %s25 = sphi 0, %s22
      %s26 = sphi 0, %s23
      %s27 = sphi 0, %s24
      %s28 = sphi 0, %s25
      %s44 = sphi 0, %s46
      %s47 = sphi 0, %s44
      %s48 = sphi 0, %s47
      %s64 = sphi 0, %s48
      %s76 = sphi 0, %s78
      %s79 = sphi 0, %s76
      %s80 = sphi 0, %s79
      %s96 = sphi 0, %s80
      %s102 = sphi 0, %s104
      %s105 = sphi 0, %s102
      %s106 = sphi 0, %s105
      %s122 = sphi 0, %s106
      %s128 = sphi 0, %s130
      %s131 = sphi 0, %s128
      %s132 = sphi 0, %s131
      %s148 = sphi 0, %s132
      %s158 = sphi 0, %s160
      %s161 = sphi 0, %s158
      %s162 = sphi 0, %s161
      %s178 = sphi 0, %s162
    $region4: #{tpu_custom_call.1} parent=1 // loop_header_branch
      %16 = sbr.rel (%p14) target = $region8
    $region5: #{tpu_custom_call.1} parent=1 // loop_body
      %s18 = ssub.s32 %s13, 1
      %s19 = ssub.s32 %s13, 2
      %s29 = sadd.s32 1, %s22
      %p30 = scmp.ge.s32.totalorder %s29, 1
      %s31 = scalar_select %p30, 0, %s29
      %s32 = sadd.s32 1, %s21
      %s33 = scalar_select %p30, %s32, %s21
      %p34 = scmp.ge.s32.totalorder %s33, 1
      %s35 = scalar_select %p34, 0, %s33
      %s36 = sadd.s32 1, %s20
      %s37 = scalar_select %p34, %s36, %s20
      %p38 = scmp.ge.s32.totalorder %s37, 2
      %s39 = scalar_select %p38, 0, %s37
      %s40 = ssub.s32 %s20, %s39
      %s41 = ssub.s32 %s21, %s35
      %s42 = sor.u32 %s40, %s41
      %p43 = scmp.eq.s32.totalorder %s42, 0
      %s45 = sadd.s32 %s44, 1
      %s46 = scalar_select %p43, %s44, %s45
      %p49 = pneg %p43
      %p50 = scmp.eq.s32.totalorder %s13, 1
      %p51 = por %p49, %p50
      %p52 = scmp.ne.s32.totalorder %s44, %s47
      %p53 = scmp.eq.s32.totalorder %s13, 0
      %p54 = por %p52, %p53
      %p55 = scmp.ne.s32.totalorder %s44, %s47
      %p56 = scmp.eq.s32.totalorder %s18, 1
      %p57 = por %p55, %p56
      %p58 = scmp.ne.s32.totalorder %s47, %s48
      %p59 = scmp.eq.s32.totalorder %s18, 0
      %p60 = por %p58, %p59
      %p61 = scmp.ne.s32.totalorder %s47, %s48
      %p62 = scmp.eq.s32.totalorder %s19, 1
      %p63 = por %p61, %p62
      %p65 = scmp.ne.s32.totalorder %s48, %s64
      %p66 = scmp.eq.s32.totalorder %s19, 0
      %p67 = por %p65, %p66
      %s68 = sadd.s32 %s21, 1
      %s69 = smul.u32 %s68, 8
      %s70 = sadd.s32 %s35, 1
      %s71 = smul.u32 %s70, 8
      %s72 = ssub.s32 %s20, %s39
      %s73 = ssub.s32 %s69, %s71
      %s74 = sor.u32 %s72, %s73
      %p75 = scmp.eq.s32.totalorder %s74, 0
      %s77 = sadd.s32 %s76, 1
      %s78 = scalar_select %p75, %s76, %s77
      %p81 = pneg %p75
      %p82 = scmp.eq.s32.totalorder %s13, 1
      %p83 = por %p81, %p82
      %p84 = scmp.ne.s32.totalorder %s76, %s79
      %p85 = scmp.eq.s32.totalorder %s13, 0
      %p86 = por %p84, %p85
      %p87 = scmp.ne.s32.totalorder %s76, %s79
      %p88 = scmp.eq.s32.totalorder %s18, 1
      %p89 = por %p87, %p88
      %p90 = scmp.ne.s32.totalorder %s79, %s80
      %p91 = scmp.eq.s32.totalorder %s18, 0
      %p92 = por %p90, %p91
      %p93 = scmp.ne.s32.totalorder %s79, %s80
      %p94 = scmp.eq.s32.totalorder %s19, 1
      %p95 = por %p93, %p94
      %p97 = scmp.ne.s32.totalorder %s80, %s96
      %p98 = scmp.eq.s32.totalorder %s19, 0
      %p99 = por %p97, %p98
      %s100 = ssub.s32 %s22, %s31
      %p101 = scmp.eq.s32.totalorder %s100, 0
      %s103 = sadd.s32 %s102, 1
      %s104 = scalar_select %p101, %s102, %s103
      %p107 = pneg %p101
      %p108 = scmp.eq.s32.totalorder %s13, 1
      %p109 = por %p107, %p108
      %p110 = scmp.ne.s32.totalorder %s102, %s105
      %p111 = scmp.eq.s32.totalorder %s13, 0
      %p112 = por %p110, %p111
      %p113 = scmp.ne.s32.totalorder %s102, %s105
      %p114 = scmp.eq.s32.totalorder %s18, 1
      %p115 = por %p113, %p114
      %p116 = scmp.ne.s32.totalorder %s105, %s106
      %p117 = scmp.eq.s32.totalorder %s18, 0
      %p118 = por %p116, %p117
      %p119 = scmp.ne.s32.totalorder %s105, %s106
      %p120 = scmp.eq.s32.totalorder %s19, 1
      %p121 = por %p119, %p120
      %p123 = scmp.ne.s32.totalorder %s106, %s122
      %p124 = scmp.eq.s32.totalorder %s19, 0
      %p125 = por %p123, %p124
      %s126 = ssub.s32 %s22, %s31
      %p127 = scmp.eq.s32.totalorder %s126, 0
      %s129 = sadd.s32 %s128, 1
      %s130 = scalar_select %p127, %s128, %s129
      %p133 = pneg %p127
      %p134 = scmp.eq.s32.totalorder %s13, 1
      %p135 = por %p133, %p134
      %p136 = scmp.ne.s32.totalorder %s128, %s131
      %p137 = scmp.eq.s32.totalorder %s13, 0
      %p138 = por %p136, %p137
      %p139 = scmp.ne.s32.totalorder %s128, %s131
      %p140 = scmp.eq.s32.totalorder %s18, 1
      %p141 = por %p139, %p140
      %p142 = scmp.ne.s32.totalorder %s131, %s132
      %p143 = scmp.eq.s32.totalorder %s18, 0
      %p144 = por %p142, %p143
      %p145 = scmp.ne.s32.totalorder %s131, %s132
      %p146 = scmp.eq.s32.totalorder %s19, 1
      %p147 = por %p145, %p146
      %p149 = scmp.ne.s32.totalorder %s132, %s148
      %p150 = scmp.eq.s32.totalorder %s19, 0
      %p151 = por %p149, %p150
      %s152 = ssub.s32 %s20, %s39
      %s153 = ssub.s32 %s21, %s35
      %s154 = sor.u32 %s152, %s153
      %s155 = ssub.s32 %s22, %s31
      %s156 = sor.u32 %s154, %s155
      %p157 = scmp.eq.s32.totalorder %s156, 0
      %s159 = sadd.s32 %s158, 1
      %s160 = scalar_select %p157, %s158, %s159
      %p163 = pneg %p157
      %p164 = scmp.eq.s32.totalorder %s13, 1
      %p165 = por %p163, %p164
      %p166 = scmp.ne.s32.totalorder %s158, %s161
      %p167 = scmp.eq.s32.totalorder %s13, 0
      %p168 = por %p166, %p167
      %p169 = scmp.ne.s32.totalorder %s158, %s161
      %p170 = scmp.eq.s32.totalorder %s18, 1
      %p171 = por %p169, %p170
      %p172 = scmp.ne.s32.totalorder %s161, %s162
      %p173 = scmp.eq.s32.totalorder %s18, 0
      %p174 = por %p172, %p173
      %p175 = scmp.ne.s32.totalorder %s161, %s162
      %p176 = scmp.eq.s32.totalorder %s19, 1
      %p177 = por %p175, %p176
      %p179 = scmp.ne.s32.totalorder %s162, %s178
      %p180 = scmp.eq.s32.totalorder %s19, 0
      %p181 = por %p179, %p180
      %p182 = scmp.le.s32.totalorder 1, %s13
      %p183 = scmp.lt.s32.totalorder %s13, 3
      %p184 = pnand %p182, %p183
      %p185 = pneg %p184
      // Predicated region
      $region9: #{tpu_custom_call.1} parent=5 // pred_check
        _
      $region10: #{tpu_custom_call.1} parent=5 // pred_check_branch
        %187 = sbr.rel (%p184) target = $region12
      $region11: #{tpu_custom_call.1} parent=5 // pred_region
        %s188 = ssub.s32 %s13, 1
        // Predicated region
        $region13: #{tpu_custom_call.1} parent=11 // pred_check
          %p189 = pneg %p118
        $region14: #{tpu_custom_call.1} parent=11 // pred_check_branch
          %191 = sbr.rel (%p189) target = $region16
        $region15: #{tpu_custom_call.1} parent=11 // pred_region
          %p192 = scmp.lt.s32.totalorder %s25, 0
          %s193 = scalar_select %p192, %s25, 0
          %s194 = smul.addr %s193, 8
          %s195 = scalar_lea.vmem %s2, %s194
        $region16: #{tpu_custom_call.1} parent=11 // pred_fallthru
          _
        // Predicated region
        $region17: #{tpu_custom_call.1} parent=11 // pred_check
          %p196 = pneg %p144
        $region18: #{tpu_custom_call.1} parent=11 // pred_check_branch
          %198 = sbr.rel (%p196) target = $region20
        $region19: #{tpu_custom_call.1} parent=11 // pred_region
          %p199 = scmp.lt.s32.totalorder %s25, 0
          %s200 = scalar_select %p199, %s25, 0
          %s201 = scalar_lea.vmem %s3, %s200
        $region20: #{tpu_custom_call.1} parent=11 // pred_fallthru
          _
      $region12: #{tpu_custom_call.1} parent=5 // pred_fallthru
        _
      %p202 = scmp.lt.s32.totalorder %s13, 2
      // Predicated region
      $region21: #{tpu_custom_call.1} parent=5 // pred_check
        %p203 = pneg %p202
      $region22: #{tpu_custom_call.1} parent=5 // pred_check_branch
        %205 = sbr.rel (%p203) target = $region24
      $region23: #{tpu_custom_call.1} parent=5 // pred_region
        // Predicated region
        $region25: #{tpu_custom_call.1} parent=23 // pred_check
          %p206 = pneg %p54
        $region26: #{tpu_custom_call.1} parent=23 // pred_check_branch
          %208 = sbr.rel (%p206) target = $region28
        $region27: #{tpu_custom_call.1} parent=23 // pred_region
          %s209 = smul.u32 8, %s21
          %s210 = ssub.s32 9, %s209
          %p211 = scmp.lt.s32.totalorder %s210, 8
          %s212 = scalar_select %p211, %s210, 8
          %s213 = smul.u32 128, %s212
          %s214 = smul.u32 %s213, 2
          %s215 = smul.u32 %s214, 2
          %p216 = scmp.lt.s32.totalorder %s20, 1
          %s217 = scalar_select %p216, %s20, 1
          %p218 = scmp.lt.s32.totalorder %s209, 8
          %s219 = scalar_select %p218, %s209, 8
          %s220 = smul.addr %s219, 4
          %s221 = smul.addr %s217, 36
          %s222 = sadd.s32 %s220, %s221
          %s223 = smul.addr %s222, 8
          %s224 = scalar_lea.vmem %s0, %s223
          %s225 = smul.u32 8, %s21
          %s226 = ssub.s32 9, %s225
          %p227 = scmp.lt.s32.totalorder %s226, 8
          %s228 = scalar_select %p227, %s226, 8
          %s229 = smul.u32 128, %s228
          %s230 = smul.u32 %s229, 2
          %s231 = smul.u32 %s230, 2
        $region28: #{tpu_custom_call.1} parent=23 // pred_fallthru
          _
        // Predicated region
        $region29: #{tpu_custom_call.1} parent=23 // pred_check
          %p232 = pneg %p86
        $region30: #{tpu_custom_call.1} parent=23 // pred_check_branch
          %234 = sbr.rel (%p232) target = $region32
        $region31: #{tpu_custom_call.1} parent=23 // pred_region
          %s235 = sadd.s32 %s21, 1
          %s236 = smul.u32 %s235, 8
          %p237 = scmp.lt.s32.totalorder %s20, 1
          %s238 = scalar_select %p237, %s20, 1
          %p239 = scmp.lt.s32.totalorder %s236, 8
          %s240 = scalar_select %p239, %s236, 8
          %s241 = smul.addr %s240, 4
          %s242 = smul.addr %s238, 36
          %s243 = sadd.s32 %s241, %s242
          %s244 = smul.addr %s243, 8
          %s245 = scalar_lea.vmem %s1, %s244
          %s246 = sadd.s32 %s21, 1
          %s247 = smul.u32 %s246, 8
        $region32: #{tpu_custom_call.1} parent=23 // pred_fallthru
          _
      $region24: #{tpu_custom_call.1} parent=5 // pred_fallthru
        _
      %p248 = scmp.le.s32.totalorder 1, %s13
      %p249 = scmp.lt.s32.totalorder %s13, 3
      %p250 = pnand %p248, %p249
      %p251 = pneg %p250
      // Predicated region
      $region33: #{tpu_custom_call.1} parent=5 // pred_check
        _
      $region34: #{tpu_custom_call.1} parent=5 // pred_check_branch
        %253 = sbr.rel (%p250) target = $region36
      $region35: #{tpu_custom_call.1} parent=5 // pred_region
        %s254 = ssub.s32 %s13, 1
        %s255 = smul.u32 8, %s24
        %s256 = ssub.s32 9, %s255
        %p257 = scmp.lt.s32.totalorder %s256, 8
        %s258 = scalar_select %p257, %s256, 8
        %s259 = smul.u32 128, %s258
        %s260 = smul.u32 %s259, 2
        %s261 = smul.u32 %s260, 2
        %p262 = scmp.lt.s32.totalorder %s23, 1
        %s263 = scalar_select %p262, %s23, 1
        %p264 = scmp.lt.s32.totalorder %s255, 8
        %s265 = scalar_select %p264, %s255, 8
        %s266 = smul.addr %s265, 4
        %s267 = smul.addr %s263, 36
        %s268 = sadd.s32 %s266, %s267
        %s269 = smul.addr %s268, 8
        %s270 = scalar_lea.vmem %s0, %s269
        %p271 = pneg %p60
        %p272 = pneg %p57
        %s273 = sadd.s32 %s24, 1
        %s274 = smul.u32 %s273, 8
        %p275 = scmp.lt.s32.totalorder %s23, 1
        %s276 = scalar_select %p275, %s23, 1
        %p277 = scmp.lt.s32.totalorder %s274, 8
        %s278 = scalar_select %p277, %s274, 8
        %s279 = smul.addr %s278, 4
        %s280 = smul.addr %s276, 36
        %s281 = sadd.s32 %s279, %s280
        %s282 = smul.addr %s281, 8
        %s283 = scalar_lea.vmem %s1, %s282
        %p284 = pneg %p92
        %p285 = pneg %p89
        %p286 = scmp.lt.s32.totalorder %s25, 0
        %s287 = scalar_select %p286, %s25, 0
        %s288 = smul.addr %s287, 8
        %s289 = scalar_lea.vmem %s2, %s288
        %p290 = pneg %p118
        %p291 = pneg %p115
        %p292 = scmp.lt.s32.totalorder %s25, 0
        %s293 = scalar_select %p292, %s25, 0
        %s294 = scalar_lea.vmem %s3, %s293
        %p295 = pneg %p144
        %p296 = pneg %p141
        %p297 = pneg %p174
        %p298 = pneg %p171
        %s299 = sand.u32 %s161, 1
        %s300 = scalar_lea.sflag [#allocation3], %s299
        %s301 = sand.u32 %s161, 1
        %s302 = smul.addr %s301, 64
        %s303 = scalar_lea.vmem [#allocation2], %s302
        %s304 = smul.u32 8, %s24
        %s305 = ssub.s32 9, %s304
        %p306 = scmp.lt.s32.totalorder %s305, 8
        %s307 = scalar_select %p306, %s305, 8
        %s308 = smul.u32 128, %s307
        %s309 = smul.u32 %s308, 2
        %s310 = smul.u32 %s309, 2
        %p311 = scmp.lt.s32.totalorder %s23, 1
        %s312 = scalar_select %p311, %s23, 1
        %p313 = scmp.lt.s32.totalorder %s304, 8
        %s314 = scalar_select %p313, %s304, 8
        %s315 = smul.addr %s314, 4
        %s316 = smul.addr %s312, 36
        %s317 = sadd.s32 %s315, %s316
        %s318 = smul.addr %s317, 8
        %s319 = scalar_lea.vmem %s0, %s318
        %s320 = smul.u32 8, %s24
        %s321 = ssub.s32 9, %s320
        %p322 = scmp.lt.s32.totalorder %s321, 8
        %s323 = scalar_select %p322, %s321, 8
        %s324 = smul.u32 128, %s323
        %s325 = smul.u32 %s324, 2
        %s326 = smul.u32 %s325, 2
        %s327 = sadd.s32 %s24, 1
        %s328 = smul.u32 %s327, 8
        %p329 = scmp.lt.s32.totalorder %s23, 1
        %s330 = scalar_select %p329, %s23, 1
        %p331 = scmp.lt.s32.totalorder %s328, 8
        %s332 = scalar_select %p331, %s328, 8
        %s333 = smul.addr %s332, 4
        %s334 = smul.addr %s330, 36
        %s335 = sadd.s32 %s333, %s334
        %s336 = smul.addr %s335, 8
        %s337 = scalar_lea.vmem %s1, %s336
        %s338 = sadd.s32 %s24, 1
        %s339 = smul.u32 %s338, 8
        %p340 = scmp.lt.s32.totalorder %s25, 0
        %s341 = scalar_select %p340, %s25, 0
        %s342 = smul.addr %s341, 8
        %s343 = scalar_lea.vmem %s2, %s342
        %p344 = scmp.lt.s32.totalorder %s25, 0
        %s345 = scalar_select %p344, %s25, 0
        %s346 = scalar_lea.vmem %s3, %s345
        %s347 = smul.u32 8, %s24
        %v348 = vld [vmem:[%s319] sm:$0xff]
        %v349 = vld [vmem:[%s319 + $0x8] sm:$0x1]
        %v350 = vld [vmem:[%s319 + $0x10] sm:$0xff]
        %v351 = vld [vmem:[%s319 + $0x18] sm:$0x1]
        %v352 = vld [vmem:[%s319 + $0x20] sm:$0xff]
        %v353 = vld [vmem:[%s319 + $0x28] sm:$0x1]
        %v354 = vld [vmem:[%s319 + $0x30] sm:$0xff]
        %v355 = vld [vmem:[%s319 + $0x38] sm:$0x1]
        %v356 = vld [vmem:[%s319 + $0x40] sm:$0xff]
        %v357 = vld [vmem:[%s319 + $0x48] sm:$0x1]
        %v358 = vld [vmem:[%s319 + $0x50] sm:$0xff]
        %v359 = vld [vmem:[%s319 + $0x58] sm:$0x1]
        %v360 = vld [vmem:[%s319 + $0x60] sm:$0xff]
        %v361 = vld [vmem:[%s319 + $0x68] sm:$0x1]
        %v362 = vld [vmem:[%s319 + $0x70] sm:$0xff]
        %v363 = vld [vmem:[%s319 + $0x78] sm:$0x1]
        %v364 = vld [vmem:[%s319 + $0x80] sm:$0xff]
        %v365 = vld [vmem:[%s319 + $0x88] sm:$0x1]
        %v366 = vld [vmem:[%s319 + $0x90] sm:$0xff]
        %v367 = vld [vmem:[%s319 + $0x98] sm:$0x1]
        %v368 = vld [vmem:[%s319 + $0xa0] sm:$0xff]
        %v369 = vld [vmem:[%s319 + $0xa8] sm:$0x1]
        %v370 = vld [vmem:[%s319 + $0xb0] sm:$0xff]
        %v371 = vld [vmem:[%s319 + $0xb8] sm:$0x1]
        %v372 = vld [vmem:[%s319 + $0xc0] sm:$0xff]
        %v373 = vld [vmem:[%s319 + $0xc8] sm:$0x1]
        %v374 = vld [vmem:[%s319 + $0xd0] sm:$0xff]
        %v375 = vld [vmem:[%s319 + $0xd8] sm:$0x1]
        %v376 = vld [vmem:[%s319 + $0xe0] sm:$0xff]
        %v377 = vld [vmem:[%s319 + $0xe8] sm:$0x1]
        %v378 = vld [vmem:[%s319 + $0xf0] sm:$0xff]
        %v379 = vld [vmem:[%s319 + $0xf8] sm:$0x1]
        %v380 = vld [vmem:[%s337] sm:$0xff]
        %v381 = vld [vmem:[%s337 + $0x8] sm:$0x1]
        %v382 = vld [vmem:[%s343] sm:$0xff]
        %v383 = vld [vmem:[%s343 + $0x8] sm:$0xf]
        %vm400 = vcmask 1046528
        %v401 = vrot.slane %v348, 1
        %v402 = vrot.slane %v349, 1
        %v403 = vsel %vm400, %v401, %v402
        %v404 = vrot.slane %v352, 1
        %v405 = vrot.slane %v353, 1
        %v406 = vsel %vm400, %v404, %v405
        %v407 = vrot.slane %v356, 1
        %v408 = vrot.slane %v357, 1
        %v409 = vsel %vm400, %v407, %v408
        %v410 = vrot.slane %v360, 1
        %v411 = vrot.slane %v361, 1
        %v412 = vsel %vm400, %v410, %v411
        %v413 = vrot.slane %v364, 1
        %v414 = vrot.slane %v365, 1
        %v415 = vsel %vm400, %v413, %v414
        %v416 = vrot.slane %v368, 1
        %v417 = vrot.slane %v369, 1
        %v418 = vsel %vm400, %v416, %v417
        %v419 = vrot.slane %v372, 1
        %v420 = vrot.slane %v373, 1
        %v421 = vsel %vm400, %v419, %v420
        %v422 = vrot.slane %v376, 1
        %v423 = vrot.slane %v377, 1
        %v424 = vsel %vm400, %v422, %v423
        %vm425 = vcmask 31744
        %v426 = vsel %vm425, %v403, 0
        %v428 = vsel %vm425, %v406, 0
        %v430 = vsel %vm425, %v409, 0
        %v432 = vsel %vm425, %v412, 0
        %v434 = vsel %vm425, %v415, 0
        %v436 = vsel %vm425, %v418, 0
        %v438 = vsel %vm425, %v421, 0
        %v440 = vsel %vm425, %v424, 0
        %vm442 = vcmask 1043456
        %v444 = vsel %vm442, %v383, 0
        %446 = vmatprep.subr.mxu0 0.0
        %447 = vmatpush1.msra.mxu0 %v444
        %448 = vmatprep.subr.mxu0 0.0
        %449 = vmatpush1.msra.mxu0 0.0
        %450 = vmatprep.subr.mxu0 0.0
        %451 = vmatpush1.msra.mxu0 0.0
        %452 = vmatprep.subr.mxu0 0.0
        %453 = vmatpush1.msra.mxu0 0.0
        %454 = vmatprep.subr.mxu0 0.0
        %455 = vmatpush1.msra.mxu0 0.0
        %456 = vmatprep.subr.mxu0 0.0
        %457 = vmatpush1.msra.mxu0 0.0
        %458 = vmatprep.subr.mxu0 0.0
        %459 = vmatpush1.msra.mxu0 0.0
        %460 = vmatprep.subr.mxu0 0.0
        %461 = vmatpush1.msra.mxu0 0.0
        %462 = vmatprep.subr.mxu0 0.0
        %463 = vmatpush1.msra.mxu0 0.0
        %464 = vmatprep.subr.mxu0 0.0
        %465 = vmatpush1.msra.mxu0 0.0
        %466 = vmatprep.subr.mxu0 0.0
        %467 = vmatpush1.msra.mxu0 0.0
        %468 = vmatprep.subr.mxu0 0.0
        %469 = vmatpush1.msra.mxu0 0.0
        %470 = vmatprep.subr.mxu0 0.0
        %471 = vmatpush1.msra.mxu0 0.0
        %472 = vmatprep.subr.mxu0 0.0
        %473 = vmatpush1.msra.mxu0 0.0
        %474 = vmatprep.subr.mxu0 0.0
        %475 = vmatpush1.msra.mxu0 0.0
        %476 = vmatprep.subr.mxu0 0.0
        %477 = vmatpush1.msra.mxu0 0.0
        %478 = vmatprep.subr.mxu0 0.0
        %479 = vmatpush1.msra.mxu0 0.0
        %480 = vmatprep.subr.mxu0 0.0
        %481 = vmatpush1.msra.mxu0 0.0
        %482 = vmatprep.subr.mxu0 0.0
        %483 = vmatpush1.msra.mxu0 0.0
        %484 = vmatprep.subr.mxu0 0.0
        %485 = vmatpush1.msra.mxu0 0.0
        %486 = vmatprep.subr.mxu0 0.0
        %487 = vmatpush1.msra.mxu0 0.0
        %488 = vmatprep.subr.mxu0 0.0
        %489 = vmatpush1.msra.mxu0 0.0
        %490 = vmatprep.subr.mxu0 0.0
        %491 = vmatpush1.msra.mxu0 0.0
        %492 = vmatprep.subr.mxu0 0.0
        %493 = vmatpush1.msra.mxu0 0.0
        %494 = vmatprep.subr.mxu0 0.0
        %495 = vmatpush1.msra.mxu0 0.0
        %496 = vmatprep.subr.mxu0 0.0
        %497 = vmatpush1.msra.mxu0 0.0
        %498 = vmatprep.subr.mxu0 0.0
        %499 = vmatpush1.msra.mxu0 0.0
        %500 = vmatprep.subr.mxu0 0.0
        %501 = vmatpush1.msra.mxu0 0.0
        %502 = vmatprep.subr.mxu0 0.0
        %503 = vmatpush1.msra.mxu0 0.0
        %504 = vmatprep.subr.mxu0 0.0
        %505 = vmatpush1.msra.mxu0 0.0
        %506 = vmatprep.subr.mxu0 0.0
        %507 = vmatpush1.msra.mxu0 0.0
        %508 = vmatprep.subr.mxu0 0.0
        %509 = vmatpush1.msra.mxu0 0.0
        %510 = vmatprep.mubr.f32.mxu0 0.0
        %511 = vmatmul.mubr.f32.gmra.mrb[0].mxu0 %v426
        %v512 = vpop.f32.mrb[0].mxu0
        %v513 = vadd.f32 0.0, %v512
        %v514 = vpop.f32.mrb[0].mxu0
        %515 = vmatprep.mubr.f32.mxu0 0.0
        %516 = vmatmul.mubr.f32.gmra.mrb[0].mxu0 %v428
        %v517 = vpop.f32.mrb[0].mxu0
        %v518 = vadd.f32 0.0, %v517
        %v519 = vpop.f32.mrb[0].mxu0
        %520 = vmatprep.mubr.f32.mxu0 0.0
        %521 = vmatmul.mubr.f32.gmra.mrb[0].mxu0 %v430
        %v522 = vpop.f32.mrb[0].mxu0
        %v523 = vadd.f32 0.0, %v522
        %v524 = vpop.f32.mrb[0].mxu0
        %525 = vmatprep.mubr.f32.mxu0 0.0
        %526 = vmatmul.mubr.f32.gmra.mrb[0].mxu0 %v432
        %v527 = vpop.f32.mrb[0].mxu0
        %v528 = vadd.f32 0.0, %v527
        %v529 = vpop.f32.mrb[0].mxu0
        %530 = vmatprep.mubr.f32.mxu0 0.0
        %531 = vmatmul.mubr.f32.gmra.mrb[0].mxu0 %v434
        %v532 = vpop.f32.mrb[0].mxu0
        %v533 = vadd.f32 0.0, %v532
        %v534 = vpop.f32.mrb[0].mxu0
        %535 = vmatprep.mubr.f32.mxu0 0.0
        %536 = vmatmul.mubr.f32.gmra.mrb[0].mxu0 %v436
        %v537 = vpop.f32.mrb[0].mxu0
        %v538 = vadd.f32 0.0, %v537
        %v539 = vpop.f32.mrb[0].mxu0
        %540 = vmatprep.mubr.f32.mxu0 0.0
        %541 = vmatmul.mubr.f32.gmra.mrb[0].mxu0 %v438
        %v542 = vpop.f32.mrb[0].mxu0
        %v543 = vadd.f32 0.0, %v542
        %v544 = vpop.f32.mrb[0].mxu0
        %545 = vmatprep.mubr.f32.mxu0 0.0
        %546 = vmatmul.mubr.f32.gmra.mrb[0].mxu0 %v440
        %v547 = vpop.f32.mrb[0].mxu0
        %v548 = vadd.f32 0.0, %v547
        %v549 = vpop.f32.mrb[0].mxu0
        %550 = vdwg.mxu0
        %vm551 = vcmask 64512
        %v552 = vsel %vm551, %v348, 0
        %v554 = vsel %vm551, %v352, 0
        %v556 = vsel %vm551, %v356, 0
        %v558 = vsel %vm551, %v360, 0
        %v560 = vsel %vm551, %v364, 0
        %v562 = vsel %vm551, %v368, 0
        %v564 = vsel %vm551, %v372, 0
        %v566 = vsel %vm551, %v376, 0
        %568 = vmatprep.subr.mxu0 0.0
        %569 = vmatpush1.msra.mxu0 %v382
        %570 = vmatprep.subr.mxu0 0.0
        %571 = vmatpush1.msra.mxu0 0.0
        %572 = vmatprep.subr.mxu0 0.0
        %573 = vmatpush1.msra.mxu0 0.0
        %574 = vmatprep.subr.mxu0 0.0
        %575 = vmatpush1.msra.mxu0 0.0
        %576 = vmatprep.subr.mxu0 0.0
        %577 = vmatpush1.msra.mxu0 0.0
        %578 = vmatprep.subr.mxu0 0.0
        %579 = vmatpush1.msra.mxu0 0.0
        %580 = vmatprep.subr.mxu0 0.0
        %581 = vmatpush1.msra.mxu0 0.0
        %582 = vmatprep.subr.mxu0 0.0
        %583 = vmatpush1.msra.mxu0 0.0
        %584 = vmatprep.subr.mxu0 0.0
        %585 = vmatpush1.msra.mxu0 0.0
        %586 = vmatprep.subr.mxu0 0.0
        %587 = vmatpush1.msra.mxu0 0.0
        %588 = vmatprep.subr.mxu0 0.0
        %589 = vmatpush1.msra.mxu0 0.0
        %590 = vmatprep.subr.mxu0 0.0
        %591 = vmatpush1.msra.mxu0 0.0
        %592 = vmatprep.subr.mxu0 0.0
        %593 = vmatpush1.msra.mxu0 0.0
        %594 = vmatprep.subr.mxu0 0.0
        %595 = vmatpush1.msra.mxu0 0.0
        %596 = vmatprep.subr.mxu0 0.0
        %597 = vmatpush1.msra.mxu0 0.0
        %598 = vmatprep.subr.mxu0 0.0
        %599 = vmatpush1.msra.mxu0 0.0
        %600 = vmatprep.subr.mxu0 0.0
        %601 = vmatpush1.msra.mxu0 0.0
        %602 = vmatprep.subr.mxu0 0.0
        %603 = vmatpush1.msra.mxu0 0.0
        %604 = vmatprep.subr.mxu0 0.0
        %605 = vmatpush1.msra.mxu0 0.0
        %606 = vmatprep.subr.mxu0 0.0
        %607 = vmatpush1.msra.mxu0 0.0
        %608 = vmatprep.subr.mxu0 0.0
        %609 = vmatpush1.msra.mxu0 0.0
        %610 = vmatprep.subr.mxu0 0.0
        %611 = vmatpush1.msra.mxu0 0.0
        %612 = vmatprep.subr.mxu0 0.0
        %613 = vmatpush1.msra.mxu0 0.0
        %614 = vmatprep.subr.mxu0 0.0
        %615 = vmatpush1.msra.mxu0 0.0
        %616 = vmatprep.subr.mxu0 0.0
        %617 = vmatpush1.msra.mxu0 0.0
        %618 = vmatprep.subr.mxu0 0.0
        %619 = vmatpush1.msra.mxu0 0.0
        %620 = vmatprep.subr.mxu0 0.0
        %621 = vmatpush1.msra.mxu0 0.0
        %622 = vmatprep.subr.mxu0 0.0
        %623 = vmatpush1.msra.mxu0 0.0
        %624 = vmatprep.subr.mxu0 0.0
        %625 = vmatpush1.msra.mxu0 0.0
        %626 = vmatprep.subr.mxu0 0.0
        %627 = vmatpush1.msra.mxu0 0.0
        %628 = vmatprep.subr.mxu0 0.0
        %629 = vmatpush1.msra.mxu0 0.0
        %630 = vmatprep.subr.mxu0 0.0
        %631 = vmatpush1.msra.mxu0 0.0
        %632 = vmatprep.mubr.f32.mxu0 0.0
        %633 = vmatmul.mubr.f32.gmra.mrb[0].mxu0 %v552
        %v634 = vpop.f32.mrb[0].mxu0
        %v635 = vadd.f32 %v513, %v634
        %v636 = vpop.f32.mrb[0].mxu0
        %637 = vmatprep.mubr.f32.mxu0 0.0
        %638 = vmatmul.mubr.f32.gmra.mrb[0].mxu0 %v554
        %v639 = vpop.f32.mrb[0].mxu0
        %v640 = vadd.f32 %v518, %v639
        %v641 = vpop.f32.mrb[0].mxu0
        %642 = vmatprep.mubr.f32.mxu0 0.0
        %643 = vmatmul.mubr.f32.gmra.mrb[0].mxu0 %v556
        %v644 = vpop.f32.mrb[0].mxu0
        %v645 = vadd.f32 %v523, %v644
        %v646 = vpop.f32.mrb[0].mxu0
        %647 = vmatprep.mubr.f32.mxu0 0.0
        %648 = vmatmul.mubr.f32.gmra.mrb[0].mxu0 %v558
        %v649 = vpop.f32.mrb[0].mxu0
        %v650 = vadd.f32 %v528, %v649
        %v651 = vpop.f32.mrb[0].mxu0
        %652 = vmatprep.mubr.f32.mxu0 0.0
        %653 = vmatmul.mubr.f32.gmra.mrb[0].mxu0 %v560
        %v654 = vpop.f32.mrb[0].mxu0
        %v655 = vadd.f32 %v533, %v654
        %v656 = vpop.f32.mrb[0].mxu0
        %657 = vmatprep.mubr.f32.mxu0 0.0
        %658 = vmatmul.mubr.f32.gmra.mrb[0].mxu0 %v562
        %v659 = vpop.f32.mrb[0].mxu0
        %v660 = vadd.f32 %v538, %v659
        %v661 = vpop.f32.mrb[0].mxu0
        %662 = vmatprep.mubr.f32.mxu0 0.0
        %663 = vmatmul.mubr.f32.gmra.mrb[0].mxu0 %v564
        %v664 = vpop.f32.mrb[0].mxu0
        %v665 = vadd.f32 %v543, %v664
        %v666 = vpop.f32.mrb[0].mxu0
        %667 = vmatprep.mubr.f32.mxu0 0.0
        %668 = vmatmul.mubr.f32.gmra.mrb[0].mxu0 %v566
        %v669 = vpop.f32.mrb[0].mxu0
        %v670 = vadd.f32 %v548, %v669
        %v671 = vpop.f32.mrb[0].mxu0
        %672 = vdwg.mxu0
        %s673 = scalar_lea.vmem %s343, 16
        %v674 = vld [vmem:[%s673] sm:$0xff]
        %v675 = vld [vmem:[%s673 + $0x8] sm:$0xf]
        %v692 = vrot.slane %v350, 1
        %v693 = vrot.slane %v351, 1
        %v694 = vsel %vm400, %v692, %v693
        %v695 = vrot.slane %v354, 1
        %v696 = vrot.slane %v355, 1
        %v697 = vsel %vm400, %v695, %v696
        %v698 = vrot.slane %v358, 1
        %v699 = vrot.slane %v359, 1
        %v700 = vsel %vm400, %v698, %v699
        %v701 = vrot.slane %v362, 1
        %v702 = vrot.slane %v363, 1
        %v703 = vsel %vm400, %v701, %v702
        %v704 = vrot.slane %v366, 1
        %v705 = vrot.slane %v367, 1
        %v706 = vsel %vm400, %v704, %v705
        %v707 = vrot.slane %v370, 1
        %v708 = vrot.slane %v371, 1
        %v709 = vsel %vm400, %v707, %v708
        %v710 = vrot.slane %v374, 1
        %v711 = vrot.slane %v375, 1
        %v712 = vsel %vm400, %v710, %v711
        %v713 = vrot.slane %v378, 1
        %v714 = vrot.slane %v379, 1
        %v715 = vsel %vm400, %v713, %v714
        %v716 = vsel %vm551, %v350, 0
        %v718 = vsel %vm551, %v354, 0
        %v720 = vsel %vm551, %v358, 0
        %v722 = vsel %vm551, %v362, 0
        %v724 = vsel %vm551, %v366, 0
        %v726 = vsel %vm551, %v370, 0
        %v728 = vsel %vm551, %v374, 0
        %v730 = vsel %vm551, %v378, 0
        %732 = vmatprep.subr.mxu0 0.0
        %733 = vmatpush1.msra.mxu0 %v674
        %734 = vmatprep.subr.mxu0 0.0
        %735 = vmatpush1.msra.mxu0 0.0
        %736 = vmatprep.subr.mxu0 0.0
        %737 = vmatpush1.msra.mxu0 0.0
        %738 = vmatprep.subr.mxu0 0.0
        %739 = vmatpush1.msra.mxu0 0.0
        %740 = vmatprep.subr.mxu0 0.0
        %741 = vmatpush1.msra.mxu0 0.0
        %742 = vmatprep.subr.mxu0 0.0
        %743 = vmatpush1.msra.mxu0 0.0
        %744 = vmatprep.subr.mxu0 0.0
        %745 = vmatpush1.msra.mxu0 0.0
        %746 = vmatprep.subr.mxu0 0.0
        %747 = vmatpush1.msra.mxu0 0.0
        %748 = vmatprep.subr.mxu0 0.0
        %749 = vmatpush1.msra.mxu0 0.0
        %750 = vmatprep.subr.mxu0 0.0
        %751 = vmatpush1.msra.mxu0 0.0
        %752 = vmatprep.subr.mxu0 0.0
        %753 = vmatpush1.msra.mxu0 0.0
        %754 = vmatprep.subr.mxu0 0.0
        %755 = vmatpush1.msra.mxu0 0.0
        %756 = vmatprep.subr.mxu0 0.0
        %757 = vmatpush1.msra.mxu0 0.0
        %758 = vmatprep.subr.mxu0 0.0
        %759 = vmatpush1.msra.mxu0 0.0
        %760 = vmatprep.subr.mxu0 0.0
        %761 = vmatpush1.msra.mxu0 0.0
        %762 = vmatprep.subr.mxu0 0.0
        %763 = vmatpush1.msra.mxu0 0.0
        %764 = vmatprep.subr.mxu0 0.0
        %765 = vmatpush1.msra.mxu0 0.0
        %766 = vmatprep.subr.mxu0 0.0
        %767 = vmatpush1.msra.mxu0 0.0
        %768 = vmatprep.subr.mxu0 0.0
        %769 = vmatpush1.msra.mxu0 0.0
        %770 = vmatprep.subr.mxu0 0.0
        %771 = vmatpush1.msra.mxu0 0.0
        %772 = vmatprep.subr.mxu0 0.0
        %773 = vmatpush1.msra.mxu0 0.0
        %774 = vmatprep.subr.mxu0 0.0
        %775 = vmatpush1.msra.mxu0 0.0
        %776 = vmatprep.subr.mxu0 0.0
        %777 = vmatpush1.msra.mxu0 0.0
        %778 = vmatprep.subr.mxu0 0.0
        %779 = vmatpush1.msra.mxu0 0.0
        %780 = vmatprep.subr.mxu0 0.0
        %781 = vmatpush1.msra.mxu0 0.0
        %782 = vmatprep.subr.mxu0 0.0
        %783 = vmatpush1.msra.mxu0 0.0
        %784 = vmatprep.subr.mxu0 0.0
        %785 = vmatpush1.msra.mxu0 0.0
        %786 = vmatprep.subr.mxu0 0.0
        %787 = vmatpush1.msra.mxu0 0.0
        %788 = vmatprep.subr.mxu0 0.0
        %789 = vmatpush1.msra.mxu0 0.0
        %790 = vmatprep.subr.mxu0 0.0
        %791 = vmatpush1.msra.mxu0 0.0
        %792 = vmatprep.subr.mxu0 0.0
        %793 = vmatpush1.msra.mxu0 0.0
        %794 = vmatprep.subr.mxu0 0.0
        %795 = vmatpush1.msra.mxu0 0.0
        %796 = vmatprep.mubr.f32.mxu0 0.0
        %797 = vmatmul.mubr.f32.gmra.mrb[0].mxu0 %v716
        %v798 = vpop.f32.mrb[0].mxu0
        %v799 = vadd.f32 0.0, %v798
        %v800 = vpop.f32.mrb[0].mxu0
        %801 = vmatprep.mubr.f32.mxu0 0.0
        %802 = vmatmul.mubr.f32.gmra.mrb[0].mxu0 %v718
        %v803 = vpop.f32.mrb[0].mxu0
        %v804 = vadd.f32 0.0, %v803
        %v805 = vpop.f32.mrb[0].mxu0
        %806 = vmatprep.mubr.f32.mxu0 0.0
        %807 = vmatmul.mubr.f32.gmra.mrb[0].mxu0 %v720
        %v808 = vpop.f32.mrb[0].mxu0
        %v809 = vadd.f32 0.0, %v808
        %v810 = vpop.f32.mrb[0].mxu0
        %811 = vmatprep.mubr.f32.mxu0 0.0
        %812 = vmatmul.mubr.f32.gmra.mrb[0].mxu0 %v722
        %v813 = vpop.f32.mrb[0].mxu0
        %v814 = vadd.f32 0.0, %v813
        %v815 = vpop.f32.mrb[0].mxu0
        %816 = vmatprep.mubr.f32.mxu0 0.0
        %817 = vmatmul.mubr.f32.gmra.mrb[0].mxu0 %v724
        %v818 = vpop.f32.mrb[0].mxu0
        %v819 = vadd.f32 0.0, %v818
        %v820 = vpop.f32.mrb[0].mxu0
        %821 = vmatprep.mubr.f32.mxu0 0.0
        %822 = vmatmul.mubr.f32.gmra.mrb[0].mxu0 %v726
        %v823 = vpop.f32.mrb[0].mxu0
        %v824 = vadd.f32 0.0, %v823
        %v825 = vpop.f32.mrb[0].mxu0
        %826 = vmatprep.mubr.f32.mxu0 0.0
        %827 = vmatmul.mubr.f32.gmra.mrb[0].mxu0 %v728
        %v828 = vpop.f32.mrb[0].mxu0
        %v829 = vadd.f32 0.0, %v828
        %v830 = vpop.f32.mrb[0].mxu0
        %831 = vmatprep.mubr.f32.mxu0 0.0
        %832 = vmatmul.mubr.f32.gmra.mrb[0].mxu0 %v730
        %v833 = vpop.f32.mrb[0].mxu0
        %v834 = vadd.f32 0.0, %v833
        %v835 = vpop.f32.mrb[0].mxu0
        %836 = vdwg.mxu0
        %v837 = vadd.f32 %v635, %v799
        %v838 = vadd.f32 %v640, %v804
        %v839 = vadd.f32 %v645, %v809
        %v840 = vadd.f32 %v650, %v814
        %v841 = vadd.f32 %v655, %v819
        %v842 = vadd.f32 %v660, %v824
        %v843 = vadd.f32 %v665, %v829
        %v844 = vadd.f32 %v670, %v834
        %v845 = vsel %vm425, %v694, 0
        %v847 = vsel %vm425, %v697, 0
        %v849 = vsel %vm425, %v700, 0
        %v851 = vsel %vm425, %v703, 0
        %v853 = vsel %vm425, %v706, 0
        %v855 = vsel %vm425, %v709, 0
        %v857 = vsel %vm425, %v712, 0
        %v859 = vsel %vm425, %v715, 0
        %v862 = vsel %vm442, %v675, 0
        %864 = vmatprep.subr.mxu0 0.0
        %865 = vmatpush1.msra.mxu0 %v862
        %866 = vmatprep.subr.mxu0 0.0
        %867 = vmatpush1.msra.mxu0 0.0
        %868 = vmatprep.subr.mxu0 0.0
        %869 = vmatpush1.msra.mxu0 0.0
        %870 = vmatprep.subr.mxu0 0.0
        %871 = vmatpush1.msra.mxu0 0.0
        %872 = vmatprep.subr.mxu0 0.0
        %873 = vmatpush1.msra.mxu0 0.0
        %874 = vmatprep.subr.mxu0 0.0
        %875 = vmatpush1.msra.mxu0 0.0
        %876 = vmatprep.subr.mxu0 0.0
        %877 = vmatpush1.msra.mxu0 0.0
        %878 = vmatprep.subr.mxu0 0.0
        %879 = vmatpush1.msra.mxu0 0.0
        %880 = vmatprep.subr.mxu0 0.0
        %881 = vmatpush1.msra.mxu0 0.0
        %882 = vmatprep.subr.mxu0 0.0
        %883 = vmatpush1.msra.mxu0 0.0
        %884 = vmatprep.subr.mxu0 0.0
        %885 = vmatpush1.msra.mxu0 0.0
        %886 = vmatprep.subr.mxu0 0.0
        %887 = vmatpush1.msra.mxu0 0.0
        %888 = vmatprep.subr.mxu0 0.0
        %889 = vmatpush1.msra.mxu0 0.0
        %890 = vmatprep.subr.mxu0 0.0
        %891 = vmatpush1.msra.mxu0 0.0
        %892 = vmatprep.subr.mxu0 0.0
        %893 = vmatpush1.msra.mxu0 0.0
        %894 = vmatprep.subr.mxu0 0.0
        %895 = vmatpush1.msra.mxu0 0.0
        %896 = vmatprep.subr.mxu0 0.0
        %897 = vmatpush1.msra.mxu0 0.0
        %898 = vmatprep.subr.mxu0 0.0
        %899 = vmatpush1.msra.mxu0 0.0
        %900 = vmatprep.subr.mxu0 0.0
        %901 = vmatpush1.msra.mxu0 0.0
        %902 = vmatprep.subr.mxu0 0.0
        %903 = vmatpush1.msra.mxu0 0.0
        %904 = vmatprep.subr.mxu0 0.0
        %905 = vmatpush1.msra.mxu0 0.0
        %906 = vmatprep.subr.mxu0 0.0
        %907 = vmatpush1.msra.mxu0 0.0
        %908 = vmatprep.subr.mxu0 0.0
        %909 = vmatpush1.msra.mxu0 0.0
        %910 = vmatprep.subr.mxu0 0.0
        %911 = vmatpush1.msra.mxu0 0.0
        %912 = vmatprep.subr.mxu0 0.0
        %913 = vmatpush1.msra.mxu0 0.0
        %914 = vmatprep.subr.mxu0 0.0
        %915 = vmatpush1.msra.mxu0 0.0
        %916 = vmatprep.subr.mxu0 0.0
        %917 = vmatpush1.msra.mxu0 0.0
        %918 = vmatprep.subr.mxu0 0.0
        %919 = vmatpush1.msra.mxu0 0.0
        %920 = vmatprep.subr.mxu0 0.0
        %921 = vmatpush1.msra.mxu0 0.0
        %922 = vmatprep.subr.mxu0 0.0
        %923 = vmatpush1.msra.mxu0 0.0
        %924 = vmatprep.subr.mxu0 0.0
        %925 = vmatpush1.msra.mxu0 0.0
        %926 = vmatprep.subr.mxu0 0.0
        %927 = vmatpush1.msra.mxu0 0.0
        %928 = vmatprep.mubr.f32.mxu0 0.0
        %929 = vmatmul.mubr.f32.gmra.mrb[0].mxu0 %v845
        %v930 = vpop.f32.mrb[0].mxu0
        %v931 = vadd.f32 0.0, %v930
        %v932 = vpop.f32.mrb[0].mxu0
        %933 = vmatprep.mubr.f32.mxu0 0.0
        %934 = vmatmul.mubr.f32.gmra.mrb[0].mxu0 %v847
        %v935 = vpop.f32.mrb[0].mxu0
        %v936 = vadd.f32 0.0, %v935
        %v937 = vpop.f32.mrb[0].mxu0
        %938 = vmatprep.mubr.f32.mxu0 0.0
        %939 = vmatmul.mubr.f32.gmra.mrb[0].mxu0 %v849
        %v940 = vpop.f32.mrb[0].mxu0
        %v941 = vadd.f32 0.0, %v940
        %v942 = vpop.f32.mrb[0].mxu0
        %943 = vmatprep.mubr.f32.mxu0 0.0
        %944 = vmatmul.mubr.f32.gmra.mrb[0].mxu0 %v851
        %v945 = vpop.f32.mrb[0].mxu0
        %v946 = vadd.f32 0.0, %v945
        %v947 = vpop.f32.mrb[0].mxu0
        %948 = vmatprep.mubr.f32.mxu0 0.0
        %949 = vmatmul.mubr.f32.gmra.mrb[0].mxu0 %v853
        %v950 = vpop.f32.mrb[0].mxu0
        %v951 = vadd.f32 0.0, %v950
        %v952 = vpop.f32.mrb[0].mxu0
        %953 = vmatprep.mubr.f32.mxu0 0.0
        %954 = vmatmul.mubr.f32.gmra.mrb[0].mxu0 %v855
        %v955 = vpop.f32.mrb[0].mxu0
        %v956 = vadd.f32 0.0, %v955
        %v957 = vpop.f32.mrb[0].mxu0
        %958 = vmatprep.mubr.f32.mxu0 0.0
        %959 = vmatmul.mubr.f32.gmra.mrb[0].mxu0 %v857
        %v960 = vpop.f32.mrb[0].mxu0
        %v961 = vadd.f32 0.0, %v960
        %v962 = vpop.f32.mrb[0].mxu0
        %963 = vmatprep.mubr.f32.mxu0 0.0
        %964 = vmatmul.mubr.f32.gmra.mrb[0].mxu0 %v859
        %v965 = vpop.f32.mrb[0].mxu0
        %v966 = vadd.f32 0.0, %v965
        %v967 = vpop.f32.mrb[0].mxu0
        %968 = vdwg.mxu0
        %v969 = vadd.f32 %v837, %v931
        %v970 = vadd.f32 %v838, %v936
        %v971 = vadd.f32 %v839, %v941
        %v972 = vadd.f32 %v840, %v946
        %v973 = vadd.f32 %v841, %v951
        %v974 = vadd.f32 %v842, %v956
        %v975 = vadd.f32 %v843, %v961
        %v976 = vadd.f32 %v844, %v966
        %s977 = scalar_lea.vmem %s343, 32
        %v978 = vld [vmem:[%s977] sm:$0xff]
        %v979 = vld [vmem:[%s977 + $0x8] sm:$0xf]
        %v982 = vrot.slane %v380, 1
        %v983 = vrot.slane %v381, 1
        %v984 = vsel %vm400, %v982, %v983
        %v985 = vsel %vm551, %v380, 0
        %987 = vmatprep.subr.mxu0 0.0
        %988 = vmatpush1.msra.mxu0 %v978
        %989 = vmatprep.subr.mxu0 0.0
        %990 = vmatpush1.msra.mxu0 0.0
        %991 = vmatprep.subr.mxu0 0.0
        %992 = vmatpush1.msra.mxu0 0.0
        %993 = vmatprep.subr.mxu0 0.0
        %994 = vmatpush1.msra.mxu0 0.0
        %995 = vmatprep.subr.mxu0 0.0
        %996 = vmatpush1.msra.mxu0 0.0
        %997 = vmatprep.subr.mxu0 0.0
        %998 = vmatpush1.msra.mxu0 0.0
        %999 = vmatprep.subr.mxu0 0.0
        %1000 = vmatpush1.msra.mxu0 0.0
        %1001 = vmatprep.subr.mxu0 0.0
        %1002 = vmatpush1.msra.mxu0 0.0
        %1003 = vmatprep.subr.mxu0 0.0
        %1004 = vmatpush1.msra.mxu0 0.0
        %1005 = vmatprep.subr.mxu0 0.0
        %1006 = vmatpush1.msra.mxu0 0.0
        %1007 = vmatprep.subr.mxu0 0.0
        %1008 = vmatpush1.msra.mxu0 0.0
        %1009 = vmatprep.subr.mxu0 0.0
        %1010 = vmatpush1.msra.mxu0 0.0
        %1011 = vmatprep.subr.mxu0 0.0
        %1012 = vmatpush1.msra.mxu0 0.0
        %1013 = vmatprep.subr.mxu0 0.0
        %1014 = vmatpush1.msra.mxu0 0.0
        %1015 = vmatprep.subr.mxu0 0.0
        %1016 = vmatpush1.msra.mxu0 0.0
        %1017 = vmatprep.subr.mxu0 0.0
        %1018 = vmatpush1.msra.mxu0 0.0
        %1019 = vmatprep.subr.mxu0 0.0
        %1020 = vmatpush1.msra.mxu0 0.0
        %1021 = vmatprep.subr.mxu0 0.0
        %1022 = vmatpush1.msra.mxu0 0.0
        %1023 = vmatprep.subr.mxu0 0.0
        %1024 = vmatpush1.msra.mxu0 0.0
        %1025 = vmatprep.subr.mxu0 0.0
        %1026 = vmatpush1.msra.mxu0 0.0
        %1027 = vmatprep.subr.mxu0 0.0
        %1028 = vmatpush1.msra.mxu0 0.0
        %1029 = vmatprep.subr.mxu0 0.0
        %1030 = vmatpush1.msra.mxu0 0.0
        %1031 = vmatprep.subr.mxu0 0.0
        %1032 = vmatpush1.msra.mxu0 0.0
        %1033 = vmatprep.subr.mxu0 0.0
        %1034 = vmatpush1.msra.mxu0 0.0
        %1035 = vmatprep.subr.mxu0 0.0
        %1036 = vmatpush1.msra.mxu0 0.0
        %1037 = vmatprep.subr.mxu0 0.0
        %1038 = vmatpush1.msra.mxu0 0.0
        %1039 = vmatprep.subr.mxu0 0.0
        %1040 = vmatpush1.msra.mxu0 0.0
        %1041 = vmatprep.subr.mxu0 0.0
        %1042 = vmatpush1.msra.mxu0 0.0
        %1043 = vmatprep.subr.mxu0 0.0
        %1044 = vmatpush1.msra.mxu0 0.0
        %1045 = vmatprep.subr.mxu0 0.0
        %1046 = vmatpush1.msra.mxu0 0.0
        %1047 = vmatprep.subr.mxu0 0.0
        %1048 = vmatpush1.msra.mxu0 0.0
        %1049 = vmatprep.subr.mxu0 0.0
        %1050 = vmatpush1.msra.mxu0 0.0
        %1051 = vmatprep.mubr.f32.mxu0 0.0
        %1052 = vmatmul.mubr.f32.gmra.mrb[0].mxu0 %v554
        %v1053 = vpop.f32.mrb[0].mxu0
        %v1054 = vadd.f32 0.0, %v1053
        %v1055 = vpop.f32.mrb[0].mxu0
        %1056 = vmatprep.mubr.f32.mxu0 0.0
        %1057 = vmatmul.mubr.f32.gmra.mrb[0].mxu0 %v556
        %v1058 = vpop.f32.mrb[0].mxu0
        %v1059 = vadd.f32 0.0, %v1058
        %v1060 = vpop.f32.mrb[0].mxu0
        %1061 = vmatprep.mubr.f32.mxu0 0.0
        %1062 = vmatmul.mubr.f32.gmra.mrb[0].mxu0 %v558
        %v1063 = vpop.f32.mrb[0].mxu0
        %v1064 = vadd.f32 0.0, %v1063
        %v1065 = vpop.f32.mrb[0].mxu0
        %1066 = vmatprep.mubr.f32.mxu0 0.0
        %1067 = vmatmul.mubr.f32.gmra.mrb[0].mxu0 %v560
        %v1068 = vpop.f32.mrb[0].mxu0
        %v1069 = vadd.f32 0.0, %v1068
        %v1070 = vpop.f32.mrb[0].mxu0
        %1071 = vmatprep.mubr.f32.mxu0 0.0
        %1072 = vmatmul.mubr.f32.gmra.mrb[0].mxu0 %v562
        %v1073 = vpop.f32.mrb[0].mxu0
        %v1074 = vadd.f32 0.0, %v1073
        %v1075 = vpop.f32.mrb[0].mxu0
        %1076 = vmatprep.mubr.f32.mxu0 0.0
        %1077 = vmatmul.mubr.f32.gmra.mrb[0].mxu0 %v564
        %v1078 = vpop.f32.mrb[0].mxu0
        %v1079 = vadd.f32 0.0, %v1078
        %v1080 = vpop.f32.mrb[0].mxu0
        %1081 = vmatprep.mubr.f32.mxu0 0.0
        %1082 = vmatmul.mubr.f32.gmra.mrb[0].mxu0 %v566
        %v1083 = vpop.f32.mrb[0].mxu0
        %v1084 = vadd.f32 0.0, %v1083
        %v1085 = vpop.f32.mrb[0].mxu0
        %1086 = vmatprep.mubr.f32.mxu0 0.0
        %1087 = vmatmul.mubr.f32.gmra.mrb[0].mxu0 %v985
        %v1088 = vpop.f32.mrb[0].mxu0
        %v1089 = vadd.f32 0.0, %v1088
        %v1090 = vpop.f32.mrb[0].mxu0
        %1091 = vdwg.mxu0
        %v1092 = vadd.f32 %v969, %v1054
        %v1093 = vadd.f32 %v970, %v1059
        %v1094 = vadd.f32 %v971, %v1064
        %v1095 = vadd.f32 %v972, %v1069
        %v1096 = vadd.f32 %v973, %v1074
        %v1097 = vadd.f32 %v974, %v1079
        %v1098 = vadd.f32 %v975, %v1084
        %v1099 = vadd.f32 %v976, %v1089
        %v1100 = vsel %vm425, %v984, 0
        %v1103 = vsel %vm442, %v979, 0
        %1105 = vmatprep.subr.mxu0 0.0
        %1106 = vmatpush1.msra.mxu0 %v1103
        %1107 = vmatprep.subr.mxu0 0.0
        %1108 = vmatpush1.msra.mxu0 0.0
        %1109 = vmatprep.subr.mxu0 0.0
        %1110 = vmatpush1.msra.mxu0 0.0
        %1111 = vmatprep.subr.mxu0 0.0
        %1112 = vmatpush1.msra.mxu0 0.0
        %1113 = vmatprep.subr.mxu0 0.0
        %1114 = vmatpush1.msra.mxu0 0.0
        %1115 = vmatprep.subr.mxu0 0.0
        %1116 = vmatpush1.msra.mxu0 0.0
        %1117 = vmatprep.subr.mxu0 0.0
        %1118 = vmatpush1.msra.mxu0 0.0
        %1119 = vmatprep.subr.mxu0 0.0
        %1120 = vmatpush1.msra.mxu0 0.0
        %1121 = vmatprep.subr.mxu0 0.0
        %1122 = vmatpush1.msra.mxu0 0.0
        %1123 = vmatprep.subr.mxu0 0.0
        %1124 = vmatpush1.msra.mxu0 0.0
        %1125 = vmatprep.subr.mxu0 0.0
        %1126 = vmatpush1.msra.mxu0 0.0
        %1127 = vmatprep.subr.mxu0 0.0
        %1128 = vmatpush1.msra.mxu0 0.0
        %1129 = vmatprep.subr.mxu0 0.0
        %1130 = vmatpush1.msra.mxu0 0.0
        %1131 = vmatprep.subr.mxu0 0.0
        %1132 = vmatpush1.msra.mxu0 0.0
        %1133 = vmatprep.subr.mxu0 0.0
        %1134 = vmatpush1.msra.mxu0 0.0
        %1135 = vmatprep.subr.mxu0 0.0
        %1136 = vmatpush1.msra.mxu0 0.0
        %1137 = vmatprep.subr.mxu0 0.0
        %1138 = vmatpush1.msra.mxu0 0.0
        %1139 = vmatprep.subr.mxu0 0.0
        %1140 = vmatpush1.msra.mxu0 0.0
        %1141 = vmatprep.subr.mxu0 0.0
        %1142 = vmatpush1.msra.mxu0 0.0
        %1143 = vmatprep.subr.mxu0 0.0
        %1144 = vmatpush1.msra.mxu0 0.0
        %1145 = vmatprep.subr.mxu0 0.0
        %1146 = vmatpush1.msra.mxu0 0.0
        %1147 = vmatprep.subr.mxu0 0.0
        %1148 = vmatpush1.msra.mxu0 0.0
        %1149 = vmatprep.subr.mxu0 0.0
        %1150 = vmatpush1.msra.mxu0 0.0
        %1151 = vmatprep.subr.mxu0 0.0
        %1152 = vmatpush1.msra.mxu0 0.0
        %1153 = vmatprep.subr.mxu0 0.0
        %1154 = vmatpush1.msra.mxu0 0.0
        %1155 = vmatprep.subr.mxu0 0.0
        %1156 = vmatpush1.msra.mxu0 0.0
        %1157 = vmatprep.subr.mxu0 0.0
        %1158 = vmatpush1.msra.mxu0 0.0
        %1159 = vmatprep.subr.mxu0 0.0
        %1160 = vmatpush1.msra.mxu0 0.0
        %1161 = vmatprep.subr.mxu0 0.0
        %1162 = vmatpush1.msra.mxu0 0.0
        %1163 = vmatprep.subr.mxu0 0.0
        %1164 = vmatpush1.msra.mxu0 0.0
        %1165 = vmatprep.subr.mxu0 0.0
        %1166 = vmatpush1.msra.mxu0 0.0
        %1167 = vmatprep.subr.mxu0 0.0
        %1168 = vmatpush1.msra.mxu0 0.0
        %1169 = vmatprep.mubr.f32.mxu0 0.0
        %1170 = vmatmul.mubr.f32.gmra.mrb[0].mxu0 %v428
        %v1171 = vpop.f32.mrb[0].mxu0
        %v1172 = vadd.f32 0.0, %v1171
        %v1173 = vpop.f32.mrb[0].mxu0
        %1174 = vmatprep.mubr.f32.mxu0 0.0
        %1175 = vmatmul.mubr.f32.gmra.mrb[0].mxu0 %v430
        %v1176 = vpop.f32.mrb[0].mxu0
        %v1177 = vadd.f32 0.0, %v1176
        %v1178 = vpop.f32.mrb[0].mxu0
        %1179 = vmatprep.mubr.f32.mxu0 0.0
        %1180 = vmatmul.mubr.f32.gmra.mrb[0].mxu0 %v432
        %v1181 = vpop.f32.mrb[0].mxu0
        %v1182 = vadd.f32 0.0, %v1181
        %v1183 = vpop.f32.mrb[0].mxu0
        %1184 = vmatprep.mubr.f32.mxu0 0.0
        %1185 = vmatmul.mubr.f32.gmra.mrb[0].mxu0 %v434
        %v1186 = vpop.f32.mrb[0].mxu0
        %v1187 = vadd.f32 0.0, %v1186
        %v1188 = vpop.f32.mrb[0].mxu0
        %1189 = vmatprep.mubr.f32.mxu0 0.0
        %1190 = vmatmul.mubr.f32.gmra.mrb[0].mxu0 %v436
        %v1191 = vpop.f32.mrb[0].mxu0
        %v1192 = vadd.f32 0.0, %v1191
        %v1193 = vpop.f32.mrb[0].mxu0
        %1194 = vmatprep.mubr.f32.mxu0 0.0
        %1195 = vmatmul.mubr.f32.gmra.mrb[0].mxu0 %v438
        %v1196 = vpop.f32.mrb[0].mxu0
        %v1197 = vadd.f32 0.0, %v1196
        %v1198 = vpop.f32.mrb[0].mxu0
        %1199 = vmatprep.mubr.f32.mxu0 0.0
        %1200 = vmatmul.mubr.f32.gmra.mrb[0].mxu0 %v440
        %v1201 = vpop.f32.mrb[0].mxu0
        %v1202 = vadd.f32 0.0, %v1201
        %v1203 = vpop.f32.mrb[0].mxu0
        %1204 = vmatprep.mubr.f32.mxu0 0.0
        %1205 = vmatmul.mubr.f32.gmra.mrb[0].mxu0 %v1100
        %v1206 = vpop.f32.mrb[0].mxu0
        %v1207 = vadd.f32 0.0, %v1206
        %v1208 = vpop.f32.mrb[0].mxu0
        %1209 = vdwg.mxu0
        %v1210 = vadd.f32 %v1092, %v1172
        %v1211 = vadd.f32 %v1093, %v1177
        %v1212 = vadd.f32 %v1094, %v1182
        %v1213 = vadd.f32 %v1095, %v1187
        %v1214 = vadd.f32 %v1096, %v1192
        %v1215 = vadd.f32 %v1097, %v1197
        %v1216 = vadd.f32 %v1098, %v1202
        %v1217 = vadd.f32 %v1099, %v1207
        %v1218 = vld [vmem:[%s346] sm:$0x1]
        %v1220 = vlaneseq
        %v1221 = vshrl.u32 %v1220, 7
        %v1222 = vsub.s32 0, %v1221
        %v1223 = vrot.slane %v1218, %v1222
        %v1225 = vadd.f32 %v1210, %v1223
        %v1226 = vadd.f32 %v1211, %v1223
        %v1227 = vadd.f32 %v1212, %v1223
        %v1228 = vadd.f32 %v1213, %v1223
        %v1229 = vadd.f32 %v1214, %v1223
        %v1230 = vadd.f32 %v1215, %v1223
        %v1231 = vadd.f32 %v1216, %v1223
        %v1232 = vadd.f32 %v1217, %v1223
        %1233 = vst [vmem:[%s303] sm:$0xff] %v1225
        %1234 = vst [vmem:[%s303 + $0x8] sm:$0xff] %v1226
        %1235 = vst [vmem:[%s303 + $0x10] sm:$0xff] %v1227
        %1236 = vst [vmem:[%s303 + $0x18] sm:$0xff] %v1228
        %1237 = vst [vmem:[%s303 + $0x20] sm:$0xff] %v1229
        %1238 = vst [vmem:[%s303 + $0x28] sm:$0xff] %v1230
        %1239 = vst [vmem:[%s303 + $0x30] sm:$0xff] %v1231
        %1240 = vst [vmem:[%s303 + $0x38] sm:$0xff] %v1232
        %s1241 = sand.u32 %s161, 1
        %s1242 = scalar_lea.sflag [#allocation3], %s1241
        %s1243 = sand.u32 %s161, 1
        %s1244 = smul.addr %s1243, 64
        %s1245 = scalar_lea.vmem [#allocation2], %s1244
        // Predicated region
        $region37: #{tpu_custom_call.1} parent=35 // pred_check
          %p1246 = pneg %p171
        $region38: #{tpu_custom_call.1} parent=35 // pred_check_branch
          %1248 = sbr.rel (%p1246) target = $region40
        $region39: #{tpu_custom_call.1} parent=35 // pred_region
          %s1249 = smul.u32 8, %s24
          %s1251 = ssub.s32 1024, 1024
          %1252 = vsyncadd %s1242, %s1251
          %s1253 = sadd.s32 %s25, %s1249
          %s1254 = smul.addr %s23, 8
          %s1255 = sadd.s32 %s1253, %s1254
          %s1256 = smul.addr %s1255, 128
          %s1257 = scalar_lea.hbm %s4, %s1256
          %s1258 = sshll.u32 %s1245, 4
          %s1259 = int_to_ptr.vmem [resolvable:$true] %s1258
          %1264 = dma.vmem_to_hbm [thread:$0]  %s1259, 1024, %s1257, %s1242, 128, 128, 8
        $region40: #{tpu_custom_call.1} parent=35 // pred_fallthru
          _
      $region36: #{tpu_custom_call.1} parent=5 // pred_fallthru
        _
      %p1265 = scmp.le.s32.totalorder 2, %s13
      // Predicated region
      $region41: #{tpu_custom_call.1} parent=5 // pred_check
        %p1266 = pneg %p1265
      $region42: #{tpu_custom_call.1} parent=5 // pred_check_branch
        %1268 = sbr.rel (%p1266) target = $region44
      $region43: #{tpu_custom_call.1} parent=5 // pred_region
        %s1269 = ssub.s32 %s13, 2
        // Predicated region
        $region45: #{tpu_custom_call.1} parent=43 // pred_check
          %p1270 = pneg %p177
        $region46: #{tpu_custom_call.1} parent=43 // pred_check_branch
          %1272 = sbr.rel (%p1270) target = $region48
        $region47: #{tpu_custom_call.1} parent=43 // pred_region
          %s1273 = sand.u32 %s162, 1
          %s1274 = scalar_lea.sflag [#allocation3], %s1273
          %s1275 = sand.u32 %s162, 1
          %s1276 = smul.addr %s1275, 64
          %s1277 = scalar_lea.vmem [#allocation2], %s1276
          %1278 = dma.done %s1274, 1024
        $region48: #{tpu_custom_call.1} parent=43 // pred_fallthru
          _
      $region44: #{tpu_custom_call.1} parent=5 // pred_fallthru
        _
    $region6: #{tpu_custom_call.1} parent=1 // loop_footer
      %s17 = sadd.s32 1, %s13
    $region7: #{tpu_custom_call.1} parent=1 // loop_footer_branch
      %12 = sbr.rel target = $region3
    $region8: #{tpu_custom_call.1} parent=1 // loop_exit
      _
    %1279 = vsyncpa [#allocation3], 1
    %s1280 = scalar_lea.sflag [#allocation3], 1
    %1281 = vsyncpa %s1280, 1

</llo_original>
